<compile_context>
chip_gen: v7x
topology: tpu7x:2x2x1
jax: 0.10.0
libtpu: 0.0.40
codegen_flags: <defaults>
</compile_context>

<pallas_src>
import functools

import jax
import jax.numpy as jnp
from jax import lax
from jax.experimental import pallas as pl
from jax.experimental.pallas import tpu as pltpu

LANE = 128          # lane width (last dim of every tile)
TR_MAX = 2048       # rows per tile: 2048*128*4B = 1 MiB per f32 input stream
CLAMP_MIN = 0.001
NCORES = 2          # shard the reduction over TensorCores (v7x); harmless on 1-TC chips


def _round_up(x, m):
    return (x + m - 1) // m * m


def _cdiv(a, b):
    return -(-a // b)


# ----------------------------- Pallas kernel ------------------------------

def _l1_partial_kernel(a_ref, p_ref, n_ref, o_ref, *, steps, count, tr):
    """Accumulate per-core partial sums of |a-p| and |a-n| into lane-dense
    (8, 128) f32 vector accumulators held in the resident output block."""
    c = pl.program_id(0)          # core index        (parallel axis)
    s = pl.program_id(1)          # reduction step    (arbitrary axis)

    @pl.when(s == 0)
    def _init():
        o_ref[...] = jnp.zeros_like(o_ref)

    block_elems = tr * LANE
    # remaining valid elements for this *logical* block; can be <= 0 on phantom
    # steps whose block index was clamped in the index_map.
    rem = count - (c * steps + s) * block_elems

    a = a_ref[...].astype(jnp.float32)            # upcast in-register (free under DMA)
    d_ap = jnp.abs(a - p_ref[...].astype(jnp.float32))
    d_an = jnp.abs(a - n_ref[...].astype(jnp.float32))

    def _accum(x_ap, x_an):
        # (tr,128) -> (tr//8, 8, 128): leading-axis sum = pure vreg (VPU) adds
        o_ref[0, 0] += x_ap.reshape(-1, 8, LANE).sum(axis=0)
        o_ref[0, 1] += x_an.reshape(-1, 8, LANE).sum(axis=0)

    @pl.when(rem >= block_elems)                  # fast path: fully valid tile
    def _full():
        _accum(d_ap, d_an)

    @pl.when(rem < block_elems)                   # ragged tail / phantom step
    def _tail():
        rows_i = lax.broadcasted_iota(jnp.int32, (tr, LANE), 0)
        lanes_i = lax.broadcasted_iota(jnp.int32, (tr, LANE), 1)
        mask = rows_i * LANE + lanes_i < rem
        # jnp.where (not mask * value) so garbage/NaN in OOB lanes cannot leak
        _accum(jnp.where(mask, d_ap, 0.0), jnp.where(mask, d_an, 0.0))


# ------------------------------- wrapper -----------------------------------

def contrastive_loss(anchor, positive, negative, *, tr_max=TR_MAX):
    """Pallas implementation of ContrastiveLoss.forward (L1Loss, mean reduction)."""
    assert anchor.shape == positive.shape == negative.shape
    assert anchor.dtype == positive.dtype == negative.dtype
    count = int(anchor.size)
    dtype = anchor.dtype

    # sublane packing granularity of the native dtype (f32: 8, bf16: 16, int8: 32)
    sub = 8 * max(1, 4 // dtype.itemsize)
    gran = sub * LANE

    a = anchor.reshape(-1)
    p = positive.reshape(-1)
    n = negative.reshape(-1)

    padded = _round_up(count, gran)
    if padded != count:
        # Fallback copy only when the size is not already (sub,128)-aligned.
        # Zero padding is exact (|0-0| = 0) and is additionally masked in-kernel.
        pad = padded - count
        a = jnp.pad(a, (0, pad))
        p = jnp.pad(p, (0, pad))
        n = jnp.pad(n, (0, pad))

    rows = padded // LANE
    tr = min(_round_up(tr_max, sub), rows)        # multiple of sub, or full extent
    a = a.reshape(rows, LANE)
    p = p.reshape(rows, LANE)
    n = n.reshape(rows, LANE)

    nblocks = _cdiv(rows, tr)
    ncores = NCORES if nblocks >= NCORES else 1
    steps = _cdiv(nblocks, ncores)
    last_block = nblocks - 1

    def in_map(c, s):
        # clamp phantom steps (c*steps + s >= nblocks) into range; the kernel
        # masks their contribution to zero via the logical element count.
        return (jnp.minimum(c * steps + s, last_block), 0)

    in_spec = pl.BlockSpec((tr, LANE), in_map)
    kernel = functools.partial(_l1_partial_kernel, steps=steps, count=count, tr=tr)

    partials = pl.pallas_call(
        kernel,
        out_shape=jax.ShapeDtypeStruct((ncores, 2, 8, LANE), jnp.float32),
        grid=(ncores, steps),
        in_specs=[in_spec, in_spec, in_spec],
        out_specs=pl.BlockSpec((1, 2, 8, LANE), lambda c, s: (c, 0, 0, 0)),
        compiler_params=pltpu.CompilerParams(
            dimension_semantics=("parallel", "arbitrary"),
            vmem_limit_bytes=32 * 1024 * 1024),
    )(a, p, n)

    # trivial scalar epilogue: combine per-core vreg partials, scale, clamp, ratio
    sums = jnp.sum(partials, axis=(0, 2, 3))      # (2,): [sum|a-p|, sum|a-n|]
    num = sums[0] / count
    den = jnp.maximum(sums[1] / count, CLAMP_MIN)
    return num / den


# --------------------------- pure-JAX reference ----------------------------

def ref_contrastive_loss(anchor, positive, negative):
    a = anchor.astype(jnp.float32)
    p = positive.astype(jnp.float32)
    n = negative.astype(jnp.float32)
    num = jnp.mean(jnp.abs(a - p))
    den = jnp.maximum(jnp.mean(jnp.abs(a - n)), CLAMP_MIN)
    return num / den


if __name__ == "__main__":
    key = jax.random.PRNGKey(0)

    cases = [
        # (shape, dtype, tr_max)
        ((2, 4, 16, 16), jnp.float32, TR_MAX),   # small, aligned, single block
        ((2, 3, 17, 9), jnp.float32, TR_MAX),    # ragged size: pad fallback + in-kernel mask
        ((4, 4, 32, 32), jnp.float32, 40),       # multi-block, 2-core split, ragged last block
        ((4, 4, 32, 32), jnp.float32, 48),       # odd block count -> phantom (clamped) step
        ((2, 4, 16, 16), jnp.bfloat16, TR_MAX),  # native bf16 DMA, f32 accumulate in-kernel
    ]
    for idx, (shape, dt, tr_max) in enumerate(cases):
        k1, k2, k3 = jax.random.split(jax.random.fold_in(key, idx), 3)
        anchor = jax.random.normal(k1, shape, jnp.float32).astype(dt)
        positive = (anchor.astype(jnp.float32)
                    + 0.1 * jax.random.normal(k2, shape, jnp.float32)).astype(dt)
        negative = jax.random.normal(k3, shape, jnp.float32).astype(dt)

        out = jax.block_until_ready(
            contrastive_loss(anchor, positive, negative, tr_max=tr_max))
        ref = jax.block_until_ready(ref_contrastive_loss(anchor, positive, negative))
        assert out.shape == (), out.shape
        assert jnp.allclose(out, ref, atol=1e-5, rtol=1e-4), (
            shape, str(dt), float(out), float(ref))

    # denominator clamp path (negative == anchor -> den clamps to 1e-3)
    ka = jax.random.fold_in(key, 99)
    anchor = jax.random.normal(ka, (2, 4, 16, 16), jnp.float32)
    positive = anchor + 0.5
    out = jax.block_until_ready(contrastive_loss(anchor, positive, anchor))
    ref = ref_contrastive_loss(anchor, positive, anchor)
    assert jnp.allclose(out, ref, atol=1e-5, rtol=1e-4), (float(out), float(ref))

    print("KERNEL_OK")
</pallas_src>

<mosaic_0001>
module attributes {stable_mosaic.version = 11 : i64} {
  func.func @_l1_partial_kernel(%arg0: i32, %arg1: i32, %arg2: memref<16x128xf32, #tpu.memory_space<vmem>>, %arg3: memref<16x128xf32, #tpu.memory_space<vmem>>, %arg4: memref<16x128xf32, #tpu.memory_space<vmem>>, %arg5: memref<1x2x8x128xf32, #tpu.memory_space<vmem>>) attributes {dimension_semantics = [#tpu.dimension_semantics<parallel>, #tpu.dimension_semantics<arbitrary>], iteration_bounds = array<i64: 1, 1>, scalar_prefetch = 0 : i64, scratch_operands = 0 : i64, tpu.core_type = #tpu.core_type<tc>, window_params = [{transform_indices = @transform_0, window_bounds = array<i64: 16, 128>}, {transform_indices = @transform_1, window_bounds = array<i64: 16, 128>}, {transform_indices = @transform_2, window_bounds = array<i64: 16, 128>}, {transform_indices = @transform_3, window_bounds = array<i64: 1, 2, 8, 128>}]} {
    %c0_i32 = arith.constant 0 : i32
    %0 = arith.cmpi eq, %arg1, %c0_i32 : i32
    %1 = arith.extui %0 : i1 to i32
    %c0_i32_0 = arith.constant 0 : i32
    %2 = arith.cmpi ne, %1, %c0_i32_0 : i32
    scf.if %2 {
      %cst = arith.constant 0.000000e+00 : f32
      %20 = vector.broadcast %cst : f32 to vector<1x2x8x128xf32>
      %c0_11 = arith.constant 0 : index
      %c0_12 = arith.constant 0 : index
      %c0_13 = arith.constant 0 : index
      %c0_14 = arith.constant 0 : index
      %21 = vector.load %arg5[%c0_11, %c0_12, %c0_13, %c0_14] : memref<1x2x8x128xf32, #tpu.memory_space<vmem>>, vector<1x2x8x128xf32>
      tpu.vector_store %arg5[%c0_11, %c0_12, %c0_13, %c0_14], %20 {strides = array<i32>} : memref<1x2x8x128xf32, #tpu.memory_space<vmem>>, vector<1x2x8x128xf32>,
    } else {
    }
    %c1_i32 = arith.constant 1 : i32
    %3 = arith.muli %arg0, %c1_i32 : i32
    %4 = arith.addi %3, %arg1 : i32
    %c2048_i32 = arith.constant 2048 : i32
    %5 = arith.muli %4, %c2048_i32 : i32
    %c2048_i32_1 = arith.constant 2048 : i32
    %6 = arith.subi %c2048_i32_1, %5 : i32
    %c0 = arith.constant 0 : index
    %c0_2 = arith.constant 0 : index
    %7 = vector.load %arg2[%c0, %c0_2] : memref<16x128xf32, #tpu.memory_space<vmem>>, vector<16x128xf32>
    %c0_3 = arith.constant 0 : index
    %c0_4 = arith.constant 0 : index
    %8 = vector.load %arg3[%c0_3, %c0_4] : memref<16x128xf32, #tpu.memory_space<vmem>>, vector<16x128xf32>
    %9 = arith.subf %7, %8 : vector<16x128xf32>
    %10 = math.absf %9 : vector<16x128xf32>
    %c0_5 = arith.constant 0 : index
    %c0_6 = arith.constant 0 : index
    %11 = vector.load %arg4[%c0_5, %c0_6] : memref<16x128xf32, #tpu.memory_space<vmem>>, vector<16x128xf32>
    %12 = arith.subf %7, %11 : vector<16x128xf32>
    %13 = math.absf %12 : vector<16x128xf32>
    %c2048_i32_7 = arith.constant 2048 : i32
    %14 = arith.cmpi sge, %6, %c2048_i32_7 : i32
    %15 = arith.extui %14 : i1 to i32
    %c0_i32_8 = arith.constant 0 : i32
    %16 = arith.cmpi ne, %15, %c0_i32_8 : i32
    scf.if %16 {
      %c0_11 = arith.constant 0 : index
      %c0_12 = arith.constant 0 : index
      %c0_13 = arith.constant 0 : index
      %c0_14 = arith.constant 0 : index
      %20 = vector.load %arg5[%c0_11, %c0_12, %c0_13, %c0_14] : memref<1x2x8x128xf32, #tpu.memory_space<vmem>>, vector<1x1x8x128xf32>
      %21 = vector.shape_cast %20 : vector<1x1x8x128xf32> to vector<8x128xf32>
      %22 = vector.shape_cast %10 : vector<16x128xf32> to vector<2x8x128xf32>
      %cst = arith.constant dense<0.000000e+00> : vector<8x128xf32>
      %23 = vector.multi_reduction <add>, %22, %cst [0] : vector<2x8x128xf32> to vector<8x128xf32>
      %24 = arith.addf %21, %23 : vector<8x128xf32>
      %c0_15 = arith.constant 0 : index
      %c0_16 = arith.constant 0 : index
      %c0_17 = arith.constant 0 : index
      %c0_18 = arith.constant 0 : index
      %25 = vector.load %arg5[%c0_15, %c0_16, %c0_17, %c0_18] : memref<1x2x8x128xf32, #tpu.memory_space<vmem>>, vector<1x1x8x128xf32>
      %26 = vector.shape_cast %25 : vector<1x1x8x128xf32> to vector<8x128xf32>
      %27 = vector.shape_cast %24 : vector<8x128xf32> to vector<1x1x8x128xf32>
      tpu.vector_store %arg5[%c0_15, %c0_16, %c0_17, %c0_18], %27 {strides = array<i32>} : memref<1x2x8x128xf32, #tpu.memory_space<vmem>>, vector<1x1x8x128xf32>,
      %c0_19 = arith.constant 0 : index
      %c1 = arith.constant 1 : index
      %c0_20 = arith.constant 0 : index
      %c0_21 = arith.constant 0 : index
      %28 = vector.load %arg5[%c0_19, %c1, %c0_20, %c0_21] : memref<1x2x8x128xf32, #tpu.memory_space<vmem>>, vector<1x1x8x128xf32>
      %29 = vector.shape_cast %28 : vector<1x1x8x128xf32> to vector<8x128xf32>
      %30 = vector.shape_cast %13 : vector<16x128xf32> to vector<2x8x128xf32>
      %cst_22 = arith.constant dense<0.000000e+00> : vector<8x128xf32>
      %31 = vector.multi_reduction <add>, %30, %cst_22 [0] : vector<2x8x128xf32> to vector<8x128xf32>
      %32 = arith.addf %29, %31 : vector<8x128xf32>
      %c0_23 = arith.constant 0 : index
      %c1_24 = arith.constant 1 : index
      %c0_25 = arith.constant 0 : index
      %c0_26 = arith.constant 0 : index
      %33 = vector.load %arg5[%c0_23, %c1_24, %c0_25, %c0_26] : memref<1x2x8x128xf32, #tpu.memory_space<vmem>>, vector<1x1x8x128xf32>
      %34 = vector.shape_cast %33 : vector<1x1x8x128xf32> to vector<8x128xf32>
      %35 = vector.shape_cast %32 : vector<8x128xf32> to vector<1x1x8x128xf32>
      tpu.vector_store %arg5[%c0_23, %c1_24, %c0_25, %c0_26], %35 {strides = array<i32>} : memref<1x2x8x128xf32, #tpu.memory_space<vmem>>, vector<1x1x8x128xf32>,
    } else {
    }
    %c2048_i32_9 = arith.constant 2048 : i32
    %17 = arith.cmpi slt, %6, %c2048_i32_9 : i32
    %18 = arith.extui %17 : i1 to i32
    %c0_i32_10 = arith.constant 0 : i32
    %19 = arith.cmpi ne, %18, %c0_i32_10 : i32
    scf.if %19 {
      %20 = tpu.iota {dimensions = array<i32: 0>} : vector<16x128xi32>
      %21 = tpu.iota {dimensions = array<i32: 1>} : vector<16x128xi32>
      %c128_i32 = arith.constant 128 : i32
      %22 = vector.broadcast %c128_i32 : i32 to vector<16x128xi32>
      %23 = arith.muli %20, %22 : vector<16x128xi32>
      %24 = arith.addi %23, %21 : vector<16x128xi32>
      %25 = vector.broadcast %6 : i32 to vector<16x128xi32>
      %26 = arith.cmpi slt, %24, %25 : vector<16x128xi32>
      %cst = arith.constant 0.000000e+00 : f32
      %27 = vector.broadcast %cst : f32 to vector<16x128xf32>
      %28 = arith.select %26, %10, %27 : vector<16x128xi1>, vector<16x128xf32>
      %cst_11 = arith.constant 0.000000e+00 : f32
      %29 = vector.broadcast %cst_11 : f32 to vector<16x128xf32>
      %30 = arith.select %26, %13, %29 : vector<16x128xi1>, vector<16x128xf32>
      %c0_12 = arith.constant 0 : index
      %c0_13 = arith.constant 0 : index
      %c0_14 = arith.constant 0 : index
      %c0_15 = arith.constant 0 : index
      %31 = vector.load %arg5[%c0_12, %c0_13, %c0_14, %c0_15] : memref<1x2x8x128xf32, #tpu.memory_space<vmem>>, vector<1x1x8x128xf32>
      %32 = vector.shape_cast %31 : vector<1x1x8x128xf32> to vector<8x128xf32>
      %33 = vector.shape_cast %28 : vector<16x128xf32> to vector<2x8x128xf32>
      %cst_16 = arith.constant dense<0.000000e+00> : vector<8x128xf32>
      %34 = vector.multi_reduction <add>, %33, %cst_16 [0] : vector<2x8x128xf32> to vector<8x128xf32>
      %35 = arith.addf %32, %34 : vector<8x128xf32>
      %c0_17 = arith.constant 0 : index
      %c0_18 = arith.constant 0 : index
      %c0_19 = arith.constant 0 : index
      %c0_20 = arith.constant 0 : index
      %36 = vector.load %arg5[%c0_17, %c0_18, %c0_19, %c0_20] : memref<1x2x8x128xf32, #tpu.memory_space<vmem>>, vector<1x1x8x128xf32>
      %37 = vector.shape_cast %36 : vector<1x1x8x128xf32> to vector<8x128xf32>
      %38 = vector.shape_cast %35 : vector<8x128xf32> to vector<1x1x8x128xf32>
      tpu.vector_store %arg5[%c0_17, %c0_18, %c0_19, %c0_20], %38 {strides = array<i32>} : memref<1x2x8x128xf32, #tpu.memory_space<vmem>>, vector<1x1x8x128xf32>,
      %c0_21 = arith.constant 0 : index
      %c1 = arith.constant 1 : index
      %c0_22 = arith.constant 0 : index
      %c0_23 = arith.constant 0 : index
      %39 = vector.load %arg5[%c0_21, %c1, %c0_22, %c0_23] : memref<1x2x8x128xf32, #tpu.memory_space<vmem>>, vector<1x1x8x128xf32>
      %40 = vector.shape_cast %39 : vector<1x1x8x128xf32> to vector<8x128xf32>
      %41 = vector.shape_cast %30 : vector<16x128xf32> to vector<2x8x128xf32>
      %cst_24 = arith.constant dense<0.000000e+00> : vector<8x128xf32>
      %42 = vector.multi_reduction <add>, %41, %cst_24 [0] : vector<2x8x128xf32> to vector<8x128xf32>
      %43 = arith.addf %40, %42 : vector<8x128xf32>
      %c0_25 = arith.constant 0 : index
      %c1_26 = arith.constant 1 : index
      %c0_27 = arith.constant 0 : index
      %c0_28 = arith.constant 0 : index
      %44 = vector.load %arg5[%c0_25, %c1_26, %c0_27, %c0_28] : memref<1x2x8x128xf32, #tpu.memory_space<vmem>>, vector<1x1x8x128xf32>
      %45 = vector.shape_cast %44 : vector<1x1x8x128xf32> to vector<8x128xf32>
      %46 = vector.shape_cast %43 : vector<8x128xf32> to vector<1x1x8x128xf32>
      tpu.vector_store %arg5[%c0_25, %c1_26, %c0_27, %c0_28], %46 {strides = array<i32>} : memref<1x2x8x128xf32, #tpu.memory_space<vmem>>, vector<1x1x8x128xf32>,
    } else {
    }
    return
  }
  func.func @transform_0(%arg0: i32, %arg1: i32) -> (i32, i32) {
    %c1_i32 = arith.constant 1 : i32
    %0 = arith.muli %arg0, %c1_i32 : i32
    %1 = arith.addi %0, %arg1 : i32
    %c0_i32 = arith.constant 0 : i32
    %2 = arith.minsi %1, %c0_i32 : i32
    %c0_i32_0 = arith.constant 0 : i32
    %c0_i32_1 = arith.constant 0 : i32
    return %2, %c0_i32_0 : i32, i32
  }
  func.func @transform_1(%arg0: i32, %arg1: i32) -> (i32, i32) {
    %c1_i32 = arith.constant 1 : i32
    %0 = arith.muli %arg0, %c1_i32 : i32
    %1 = arith.addi %0, %arg1 : i32
    %c0_i32 = arith.constant 0 : i32
    %2 = arith.minsi %1, %c0_i32 : i32
    %c0_i32_0 = arith.constant 0 : i32
    %c0_i32_1 = arith.constant 0 : i32
    return %2, %c0_i32_0 : i32, i32
  }
  func.func @transform_2(%arg0: i32, %arg1: i32) -> (i32, i32) {
    %c1_i32 = arith.constant 1 : i32
    %0 = arith.muli %arg0, %c1_i32 : i32
    %1 = arith.addi %0, %arg1 : i32
    %c0_i32 = arith.constant 0 : i32
    %2 = arith.minsi %1, %c0_i32 : i32
    %c0_i32_0 = arith.constant 0 : i32
    %c0_i32_1 = arith.constant 0 : i32
    return %2, %c0_i32_0 : i32, i32
  }
  func.func @transform_3(%arg0: i32, %arg1: i32) -> (i32, i32, i32, i32) {
    %c0_i32 = arith.constant 0 : i32
    %c0_i32_0 = arith.constant 0 : i32
    %c0_i32_1 = arith.constant 0 : i32
    %c0_i32_2 = arith.constant 0 : i32
    return %arg0, %c0_i32, %c0_i32_0, %c0_i32_1 : i32, i32, i32, i32
  }
}

</mosaic_0001>

<llo_original>
// kernel: tpu_custom_call.1
$region0: #{tpu_custom_call.1}
  #allocation0 [shape = 'u32[]', space=smem, size = 0x4, offset = 0x4, fixed_abs, tag = 'smem constant byte address 0x4 - core index']
  #allocation1 [shape = 'u32[144,128]{1,0:T(1,128)}', space=vmem, size = 0x12000, scoped, tag = 'internal scratch']
  %s0 = inlined_call_operand.hbm [shape: f32[16,128], index: 0, kind: input, shape index: {}]
  %s1 = inlined_call_operand.hbm [shape: f32[16,128], index: 1, kind: input, shape index: {}]
  %s2 = inlined_call_operand.hbm [shape: f32[16,128], index: 2, kind: input, shape index: {}]
  %s3 = inlined_call_operand.hbm [shape: f32[1,2,8,128], index: 3, kind: output, shape index: {}]
  %s4 = sld [smem:[#allocation0]]
  $region46: #{tpu_custom_call.1} parent=0
    _
  %s6 = ssub.s32 1, %s4
  %s7 = scalar_select 0, %s6, %s4
  $region1: #{tpu_custom_call.1} parent=0
    #allocation2 [shape = 'u8[8192]{0}', space=vmem, size = 0x2000, scoped, tag = 'input window, operand 0, single buffered']
    #allocation3 [shape = 's32[1]{0}', space=sflag, size = 0x4, scoped, tag = 'scoped memory for tpu_custom_call.1']
    #allocation4 [shape = 's32[1]{0}', space=sflag, size = 0x4, scoped, tag = 'scoped memory for tpu_custom_call.1']
    #allocation5 [shape = 'u8[8192]{0}', space=vmem, size = 0x2000, scoped, tag = 'input window, operand 1, single buffered']
    #allocation6 [shape = 's32[1]{0}', space=sflag, size = 0x4, scoped, tag = 'scoped memory for tpu_custom_call.1']
    #allocation7 [shape = 'u8[8192]{0}', space=vmem, size = 0x2000, scoped, tag = 'input window, operand 2, single buffered']
    #allocation8 [shape = 'u8[8192]{0}', space=vmem, size = 0x2000, scoped, tag = 'output window, operand 0, single buffered']
    %8 = vsyncpa [#allocation3], 0
    %9 = vsyncpa [#allocation6], 0
    %10 = vsyncpa [#allocation4], 0
    // Predicated region
    $region2: #{tpu_custom_call.1} parent=1 // pred_check
      _
    $region3: #{tpu_custom_call.1} parent=1 // pred_check_branch
      %12 = sbr.rel (0) target = $region5
    $region4: #{tpu_custom_call.1} parent=1 // pred_region
      %s13 = sadd.s32 0, 0
      %p14 = scmp.lt.s32.totalorder %s13, 0
      %s15 = scalar_select %p14, %s13, 0
      %s16 = smul.u32 2, %s15
      %s18 = ssub.s32 256, 256
      %19 = vsyncadd [#allocation3], %s18
      %s20 = smul.addr %s16, 128
      %s21 = scalar_lea.hbm %s0, %s20
      %s22 = sshll.u32 [#allocation2], 4
      %s23 = int_to_ptr.vmem [resolvable:$true] %s22
      %28 = dma.hbm_to_vmem [thread:$0]  %s21, 256, %s23, [#allocation3], 128, 128, 8
    $region5: #{tpu_custom_call.1} parent=1 // pred_fallthru
      _
    // Predicated region
    $region6: #{tpu_custom_call.1} parent=1 // pred_check
      _
    $region7: #{tpu_custom_call.1} parent=1 // pred_check_branch
      %30 = sbr.rel (0) target = $region9
    $region8: #{tpu_custom_call.1} parent=1 // pred_region
      %s31 = sadd.s32 0, 0
      %p32 = scmp.lt.s32.totalorder %s31, 0
      %s33 = scalar_select %p32, %s31, 0
      %s34 = smul.u32 2, %s33
      %s36 = ssub.s32 256, 256
      %37 = vsyncadd [#allocation6], %s36
      %s38 = smul.addr %s34, 128
      %s39 = scalar_lea.hbm %s1, %s38
      %s40 = sshll.u32 [#allocation5], 4
      %s41 = int_to_ptr.vmem [resolvable:$true] %s40
      %46 = dma.hbm_to_vmem [thread:$0]  %s39, 256, %s41, [#allocation6], 128, 128, 8
    $region9: #{tpu_custom_call.1} parent=1 // pred_fallthru
      _
    // Predicated region
    $region10: #{tpu_custom_call.1} parent=1 // pred_check
      _
    $region11: #{tpu_custom_call.1} parent=1 // pred_check_branch
      %48 = sbr.rel (0) target = $region13
    $region12: #{tpu_custom_call.1} parent=1 // pred_region
      %s49 = sadd.s32 0, 0
      %p50 = scmp.lt.s32.totalorder %s49, 0
      %s51 = scalar_select %p50, %s49, 0
      %s52 = smul.u32 2, %s51
      %s54 = ssub.s32 256, 256
      %55 = vsyncadd [#allocation6], %s54
      %s56 = smul.addr %s52, 128
      %s57 = scalar_lea.hbm %s2, %s56
      %s58 = sshll.u32 [#allocation7], 4
      %s59 = int_to_ptr.vmem [resolvable:$true] %s58
      %64 = dma.hbm_to_vmem [thread:$0]  %s57, 256, %s59, [#allocation6], 128, 128, 8
    $region13: #{tpu_custom_call.1} parent=1 // pred_fallthru
      _
    // Predicated region
    $region14: #{tpu_custom_call.1} parent=1 // pred_check
      _
    $region15: #{tpu_custom_call.1} parent=1 // pred_check_branch
      %66 = sbr.rel (0) target = $region17
    $region16: #{tpu_custom_call.1} parent=1 // pred_region
      %67 = dma.done [#allocation3], 256
    $region17: #{tpu_custom_call.1} parent=1 // pred_fallthru
      _
    // Predicated region
    $region18: #{tpu_custom_call.1} parent=1 // pred_check
      _
    $region19: #{tpu_custom_call.1} parent=1 // pred_check_branch
      %69 = sbr.rel (0) target = $region21
    $region20: #{tpu_custom_call.1} parent=1 // pred_region
      %70 = dma.done [#allocation6], 256
    $region21: #{tpu_custom_call.1} parent=1 // pred_fallthru
      _
    // Predicated region
    $region22: #{tpu_custom_call.1} parent=1 // pred_check
      _
    $region23: #{tpu_custom_call.1} parent=1 // pred_check_branch
      %72 = sbr.rel (0) target = $region25
    $region24: #{tpu_custom_call.1} parent=1 // pred_region
      %73 = dma.done [#allocation6], 256
    $region25: #{tpu_custom_call.1} parent=1 // pred_fallthru
      _
    %s74 = sadd.s32 0, 0
    %p75 = scmp.lt.s32.totalorder %s74, 0
    %s76 = scalar_select %p75, %s74, 0
    %s77 = smul.u32 2, %s76
    %s78 = sadd.s32 0, 0
    %p79 = scmp.lt.s32.totalorder %s78, 0
    %s80 = scalar_select %p79, %s78, 0
    %s81 = smul.u32 2, %s80
    %s82 = sadd.s32 0, 0
    %p83 = scmp.lt.s32.totalorder %s82, 0
    %s84 = scalar_select %p83, %s82, 0
    %s85 = smul.u32 2, %s84
    %p86 = scmp.eq.s32.totalorder 0, 0
    // Predicated region
    $region26: #{tpu_custom_call.1} parent=1 // pred_check
      %p87 = pneg %p86
    $region27: #{tpu_custom_call.1} parent=1 // pred_check_branch
      %89 = sbr.rel (%p87) target = $region29
    $region28: #{tpu_custom_call.1} parent=1 // pred_region
      %90 = vst [vmem:[#allocation8] sm:$0xff] 0.0
      %91 = vst [vmem:[#allocation8 + $0x8] sm:$0xff] 0.0
    $region29: #{tpu_custom_call.1} parent=1 // pred_fallthru
      _
    %s92 = sadd.s32 0, 0
    %s93 = smul.u32 %s92, 2048
    %s94 = ssub.s32 2048, %s93
    %v95 = vld [vmem:[#allocation2] sm:$0xff]
    %v96 = vld [vmem:[#allocation2 + $0x8] sm:$0xff]
    %v97 = vld [vmem:[#allocation5] sm:$0xff]
    %v98 = vld [vmem:[#allocation5 + $0x8] sm:$0xff]
    %v99 = vsub.f32 %v95, %v97
    %v100 = vsub.f32 %v96, %v98
    %v101 = vand.u32 2147483647, %v99
    %v102 = vand.u32 2147483647, %v100
    %v103 = vld [vmem:[#allocation7] sm:$0xff]
    %v104 = vld [vmem:[#allocation7 + $0x8] sm:$0xff]
    %v105 = vsub.f32 %v95, %v103
    %v106 = vsub.f32 %v96, %v104
    %v107 = vand.u32 2147483647, %v105
    %v108 = vand.u32 2147483647, %v106
    %p109 = scmp.ge.s32.totalorder %s94, 2048
    // Predicated region
    $region30: #{tpu_custom_call.1} parent=1 // pred_check
      %p110 = pneg %p109
    $region31: #{tpu_custom_call.1} parent=1 // pred_check_branch
      %112 = sbr.rel (%p110) target = $region33
    $region32: #{tpu_custom_call.1} parent=1 // pred_region
      %v113 = vld [vmem:[#allocation8] sm:$0xff]
      %v114 = vadd.f32 %v101, %v102
      %v115 = vadd.f32 %v113, %v114
      %116 = vst [vmem:[#allocation8] sm:$0xff] %v115
      %s117 = scalar_lea.vmem [#allocation8], 8
      %v118 = vld [vmem:[%s117] sm:$0xff]
      %v119 = vadd.f32 %v107, %v108
      %v120 = vadd.f32 %v118, %v119
      %121 = vst [vmem:[%s117] sm:$0xff] %v120
    $region33: #{tpu_custom_call.1} parent=1 // pred_fallthru
      _
    %p122 = scmp.lt.s32.totalorder %s94, 2048
    // Predicated region
    $region34: #{tpu_custom_call.1} parent=1 // pred_check
      %p123 = pneg %p122
    $region35: #{tpu_custom_call.1} parent=1 // pred_check_branch
      %125 = sbr.rel (%p123) target = $region37
    $region36: #{tpu_custom_call.1} parent=1 // pred_region
      %v126 = vlaneseq
      %v127 = vshrl.u32 %v126, 7
      %v128 = vadd.s32 %v127, 8
      %v129 = vlaneseq
      %v130 = vand.u32 %v129, 127
      %v131 = vmul.u32 %v127, 128
      %v132 = vmul.u32 %v128, 128
      %v133 = vadd.s32 %v131, %v130
      %v134 = vadd.s32 %v132, %v130
      %v135 = vstv %s94
      %vm136 = vcmp.lt.s32.totalorder %v133, %v135
      %vm137 = vcmp.lt.s32.totalorder %v134, %v135
      %v138 = vsel %vm136, %v101, 0.0
      %v139 = vsel %vm137, %v102, 0.0
      %v140 = vsel %vm136, %v107, 0.0
      %v141 = vsel %vm137, %v108, 0.0
      %v142 = vld [vmem:[#allocation8] sm:$0xff]
      %v143 = vadd.f32 %v138, %v139
      %v144 = vadd.f32 %v142, %v143
      %145 = vst [vmem:[#allocation8] sm:$0xff] %v144
      %s146 = scalar_lea.vmem [#allocation8], 8
      %v147 = vld [vmem:[%s146] sm:$0xff]
      %v148 = vadd.f32 %v140, %v141
      %v149 = vadd.f32 %v147, %v148
      %150 = vst [vmem:[%s146] sm:$0xff] %v149
    $region37: #{tpu_custom_call.1} parent=1 // pred_fallthru
      _
    // Predicated region
    $region38: #{tpu_custom_call.1} parent=1 // pred_check
      _
    $region39: #{tpu_custom_call.1} parent=1 // pred_check_branch
      %152 = sbr.rel (0) target = $region41
    $region40: #{tpu_custom_call.1} parent=1 // pred_region
      %s154 = ssub.s32 256, 256
      %155 = vsyncadd [#allocation4], %s154
      %s156 = sshll.u32 [#allocation8], 4
      %s157 = int_to_ptr.vmem [resolvable:$true] %s156
      %162 = dma.vmem_to_hbm [thread:$0]  %s157, 256, %s3, [#allocation4], 128, 128, 8
    $region41: #{tpu_custom_call.1} parent=1 // pred_fallthru
      _
    // Predicated region
    $region42: #{tpu_custom_call.1} parent=1 // pred_check
      _
    $region43: #{tpu_custom_call.1} parent=1 // pred_check_branch
      %164 = sbr.rel (0) target = $region45
    $region44: #{tpu_custom_call.1} parent=1 // pred_region
      %165 = dma.done [#allocation4], 256
    $region45: #{tpu_custom_call.1} parent=1 // pred_fallthru
      _
    %166 = vsyncpa [#allocation3], 1
    %167 = vsyncpa [#allocation6], 1
    %168 = vsyncpa [#allocation4], 1

</llo_original>
